<compile_context>
chip_gen: v7x
topology: tpu7x:2x2x1
jax: 0.10.0
libtpu: 0.0.40
codegen_flags: <defaults>
</compile_context>

<pallas_src>
import jax
import jax.numpy as jnp
from jax.experimental import pallas as pl
from jax.experimental.pallas import tpu as pltpu


# -----------------------------------------------------------------------------
# Pallas kernel: fused embedding pooling + statistic pooling + en_layer + predictor
# -----------------------------------------------------------------------------
def _task_encoder_kernel(y_ref,                         # (N, 1)  int32
                         x_ref,                         # (N, Dx) f32,  Dx = feat_num*emb_size
                         emb_ref,                       # (num_class, Dy) f32, Dy = emb_size
                         w1vx_ref, w1vy_ref,            # (Dx, hid), (Dy, hid)
                         w1mx_ref, w1my_ref,            # (Dx, hid), (Dy, hid)
                         b1_ref,                        # (1, hid)
                         w2_ref, b2_ref,                # (hid, hid), (1, hid)
                         w3_ref, b3_ref,                # (hid, task), (1, task)
                         wp_ref, bp_ref,                # (task, task), (1, task)
                         out_ref):                      # (1, task)
    x = x_ref[...]                                      # (N, Dx)
    emb = emb_ref[...]                                  # (C, Dy)
    n = x.shape[0]
    num_class = emb.shape[0]

    inv_n = 1.0 / n
    inv_nm1 = 1.0 / (n - 1)          # NOTE: N == 1 is undefined, same as torch.var(unbiased)

    # --- x stats over samples (dim 0): stable two-pass mean / unbiased var ---
    mean_x = jnp.sum(x, axis=0, keepdims=True) * inv_n                  # (1, Dx)
    dx = x - mean_x
    var_x = jnp.sum(dx * dx, axis=0, keepdims=True) * inv_nm1           # (1, Dx)

    # --- fused embedding gather + pooling via per-class counts ---
    onehot = (y_ref[...] ==
              jax.lax.broadcasted_iota(jnp.int32, (n, num_class), 1)).astype(jnp.float32)
    counts = jnp.sum(onehot, axis=0, keepdims=True)                     # (1, C)
    mean_y = jnp.dot(counts, emb, preferred_element_type=jnp.float32) * inv_n   # (1, Dy)
    de = emb - mean_y                                                   # (C, Dy)
    var_y = jnp.dot(counts, de * de,
                    preferred_element_type=jnp.float32) * inv_nm1       # (1, Dy)

    def lrelu(v):                                       # LeakyReLU(0.01)
        return jnp.where(v > 0, v, 0.01 * v)

    # --- en_layer layer 1: w1 pre-split along fan_in -> no lane-axis concat ---
    h = (jnp.dot(var_x,  w1vx_ref[...], preferred_element_type=jnp.float32)
         + jnp.dot(var_y,  w1vy_ref[...], preferred_element_type=jnp.float32)
         + jnp.dot(mean_x, w1mx_ref[...], preferred_element_type=jnp.float32)
         + jnp.dot(mean_y, w1my_ref[...], preferred_element_type=jnp.float32)
         + b1_ref[...])
    h = lrelu(h)
    h = lrelu(jnp.dot(h, w2_ref[...], preferred_element_type=jnp.float32) + b2_ref[...])
    h = jnp.dot(h, w3_ref[...], preferred_element_type=jnp.float32) + b3_ref[...]

    # --- predictor ---
    out_ref[...] = jnp.dot(h, wp_ref[...], preferred_element_type=jnp.float32) + bp_ref[...]


def _vmem_spec():
    return pl.BlockSpec(memory_space=pltpu.MemorySpace.VMEM)


@jax.jit
def task_encoder_forward(x, y, params):
    """x: (N, feat_num*emb_size) f32, y: (N,) int class ids -> (task_dim,) f32."""
    y2d = y.astype(jnp.int32).reshape(-1, 1)            # int32 column for in-kernel one-hot
    task_dim = params["wp"].shape[0]

    operands = (y2d, x.astype(jnp.float32), params["emb_y"],
                params["w1_vx"], params["w1_vy"], params["w1_mx"], params["w1_my"],
                params["b1"],
                params["w2"], params["b2"],
                params["w3"], params["b3"],
                params["wp"], params["bp"])

    out = pl.pallas_call(
        _task_encoder_kernel,
        out_shape=jax.ShapeDtypeStruct((1, task_dim), jnp.float32),
        in_specs=[_vmem_spec() for _ in operands],
        out_specs=_vmem_spec(),
    )(*operands)
    return out.reshape(-1)


# -----------------------------------------------------------------------------
# Deterministic parameter initialization (mirrors the module's __init__ shapes)
# -----------------------------------------------------------------------------
def init_params(key, *, num_class, emb_size, feat_num, task_dim, clusters_k):
    in_dim = 2 * (feat_num + 1) * emb_size
    hid_dim = in_dim // 2
    dx = feat_num * emb_size
    dy = emb_size
    d = dx + dy
    ks = jax.random.split(key, 10)

    def linear(kw, kb, fan_in, fan_out):
        # PyTorch nn.Linear default: U(-1/sqrt(fan_in), 1/sqrt(fan_in)); stored (fan_in, fan_out)
        bound = float(fan_in) ** -0.5
        w = jax.random.uniform(kw, (fan_in, fan_out), jnp.float32, -bound, bound)
        b = jax.random.uniform(kb, (1, fan_out), jnp.float32, -bound, bound)
        return w, b

    emb_y = jax.random.normal(ks[0], (num_class, emb_size), jnp.float32)
    w1, b1 = linear(ks[1], ks[2], in_dim, hid_dim)
    w2, b2 = linear(ks[3], ks[4], hid_dim, hid_dim)
    w3, b3 = linear(ks[5], ks[6], hid_dim, task_dim)
    wp, bp = linear(ks[7], ks[8], task_dim, task_dim)

    # Pre-split w1 along fan_in: original h layout is [var_x | var_y | mean_x | mean_y].
    w1_vx = w1[0:dx]
    w1_vy = w1[dx:d]
    w1_mx = w1[d:d + dx]
    w1_my = w1[d + dx:2 * d]

    # MemoryUnit.array (xavier-uniform), kept for shape fidelity; unused by forward().
    xav = (6.0 / (clusters_k + task_dim)) ** 0.5
    mem_array = jax.random.uniform(ks[9], (clusters_k, task_dim), jnp.float32, -xav, xav)

    return dict(emb_y=emb_y,
                w1=w1,                                   # full weight, used by the reference only
                w1_vx=w1_vx, w1_vy=w1_vy, w1_mx=w1_mx, w1_my=w1_my,
                b1=b1, w2=w2, b2=b2, w3=w3, b3=b3, wp=wp, bp=bp,
                mem_array=mem_array)


# -----------------------------------------------------------------------------
# Pure-JAX reference (mirrors the PyTorch forward exactly, uses the full w1)
# -----------------------------------------------------------------------------
def reference_forward(x, y, p):
    y_emb = p["emb_y"][y]
    inputs = jnp.concatenate([x, y_emb], axis=1)
    mean = jnp.mean(inputs, axis=0)
    var = jnp.var(inputs, axis=0, ddof=1)
    h = jnp.concatenate([var, mean])[None, :]

    def lrelu(v):
        return jnp.where(v > 0, v, 0.01 * v)

    h = lrelu(h @ p["w1"] + p["b1"])
    h = lrelu(h @ p["w2"] + p["b2"])
    h = h @ p["w3"] + p["b3"]
    out = h @ p["wp"] + p["bp"]
    return out.reshape(-1)


if __name__ == "__main__":
    # small, module-consistent shapes
    N          = 8          # support-set size (<= max_shot * num_class); must be >= 2 for var
    num_class  = 5
    emb_size   = 8
    feat_num   = 3
    task_dim   = 16
    clusters_k = 4

    key = jax.random.PRNGKey(0)
    k_param, k_x, k_y = jax.random.split(key, 3)

    params = init_params(k_param, num_class=num_class, emb_size=emb_size,
                         feat_num=feat_num, task_dim=task_dim, clusters_k=clusters_k)

    x = jax.random.normal(k_x, (N, feat_num * emb_size), jnp.float32)
    y = jax.random.randint(k_y, (N,), 0, num_class, jnp.int32)

    out = jax.block_until_ready(task_encoder_forward(x, y, params))
    ref = reference_forward(x, y, params)

    assert out.shape == (task_dim,)
    assert jnp.allclose(out, ref, atol=1e-4, rtol=1e-4), (out, ref)

    print("KERNEL_OK")
</pallas_src>

<mosaic_0001>
module attributes {stable_mosaic.version = 11 : i64} {
  func.func @_task_encoder_kernel(%arg0: memref<8x1xi32, #tpu.memory_space<vmem>>, %arg1: memref<8x24xf32, #tpu.memory_space<vmem>>, %arg2: memref<5x8xf32, #tpu.memory_space<vmem>>, %arg3: memref<24x32xf32, #tpu.memory_space<vmem>>, %arg4: memref<8x32xf32, #tpu.memory_space<vmem>>, %arg5: memref<24x32xf32, #tpu.memory_space<vmem>>, %arg6: memref<8x32xf32, #tpu.memory_space<vmem>>, %arg7: memref<1x32xf32, #tpu.memory_space<vmem>>, %arg8: memref<32x32xf32, #tpu.memory_space<vmem>>, %arg9: memref<1x32xf32, #tpu.memory_space<vmem>>, %arg10: memref<32x16xf32, #tpu.memory_space<vmem>>, %arg11: memref<1x16xf32, #tpu.memory_space<vmem>>, %arg12: memref<16x16xf32, #tpu.memory_space<vmem>>, %arg13: memref<1x16xf32, #tpu.memory_space<vmem>>, %arg14: memref<1x16xf32, #tpu.memory_space<vmem>>) attributes {dimension_semantics = [], scalar_prefetch = 0 : i64, scratch_operands = 0 : i64, tpu.core_type = #tpu.core_type<tc>} {
    %c0 = arith.constant 0 : index
    %c0_0 = arith.constant 0 : index
    %0 = vector.load %arg1[%c0, %c0_0] : memref<8x24xf32, #tpu.memory_space<vmem>>, vector<8x24xf32>
    %c0_1 = arith.constant 0 : index
    %c0_2 = arith.constant 0 : index
    %1 = vector.load %arg2[%c0_1, %c0_2] : memref<5x8xf32, #tpu.memory_space<vmem>>, vector<5x8xf32>
    %cst = arith.constant dense<0.000000e+00> : vector<24xf32>
    %2 = vector.multi_reduction <add>, %0, %cst [0] : vector<8x24xf32> to vector<24xf32>
    %3 = vector.shape_cast %2 : vector<24xf32> to vector<1x24xf32>
    %cst_3 = arith.constant 1.250000e-01 : f32
    %4 = vector.broadcast %cst_3 : f32 to vector<1x24xf32>
    %5 = arith.mulf %3, %4 : vector<1x24xf32>
    %6 = vector.broadcast %5 : vector<1x24xf32> to vector<8x24xf32>
    %7 = arith.subf %0, %6 : vector<8x24xf32>
    %8 = arith.mulf %7, %7 : vector<8x24xf32>
    %cst_4 = arith.constant dense<0.000000e+00> : vector<24xf32>
    %9 = vector.multi_reduction <add>, %8, %cst_4 [0] : vector<8x24xf32> to vector<24xf32>
    %10 = vector.shape_cast %9 : vector<24xf32> to vector<1x24xf32>
    %cst_5 = arith.constant 0.142857149 : f32
    %11 = vector.broadcast %cst_5 : f32 to vector<1x24xf32>
    %12 = arith.mulf %10, %11 : vector<1x24xf32>
    %c0_6 = arith.constant 0 : index
    %c0_7 = arith.constant 0 : index
    %13 = vector.load %arg0[%c0_6, %c0_7] : memref<8x1xi32, #tpu.memory_space<vmem>>, vector<8x1xi32>
    %14 = tpu.iota {dimensions = array<i32: 1>} : vector<8x5xi32>
    %15 = vector.broadcast %13 : vector<8x1xi32> to vector<8x5xi32>
    %16 = arith.cmpi eq, %15, %14 : vector<8x5xi32>
    %17 = arith.extui %16 : vector<8x5xi1> to vector<8x5xi32>
    %18 = arith.sitofp %17 : vector<8x5xi32> to vector<8x5xf32>
    %cst_8 = arith.constant dense<0.000000e+00> : vector<5xf32>
    %19 = vector.multi_reduction <add>, %18, %cst_8 [0] : vector<8x5xf32> to vector<5xf32>
    %20 = vector.shape_cast %19 : vector<5xf32> to vector<1x5xf32>
    %cst_9 = arith.constant dense<0.000000e+00> : vector<1x8xf32>
    %21 = tpu.matmul %20, %1, %cst_9 {dimension_numbers = #tpu.dot_dimension_numbers<[1], [0], [0], [1], [0, 0, 1, 1], [], []>} : vector<1x5xf32>, vector<5x8xf32>, vector<1x8xf32> -> vector<1x8xf32>
    %cst_10 = arith.constant 1.250000e-01 : f32
    %22 = vector.broadcast %cst_10 : f32 to vector<1x8xf32>
    %23 = arith.mulf %21, %22 : vector<1x8xf32>
    %24 = vector.broadcast %23 : vector<1x8xf32> to vector<5x8xf32>
    %25 = arith.subf %1, %24 : vector<5x8xf32>
    %26 = arith.mulf %25, %25 : vector<5x8xf32>
    %cst_11 = arith.constant dense<0.000000e+00> : vector<1x8xf32>
    %27 = tpu.matmul %20, %26, %cst_11 {dimension_numbers = #tpu.dot_dimension_numbers<[1], [0], [0], [1], [0, 0, 1, 1], [], []>} : vector<1x5xf32>, vector<5x8xf32>, vector<1x8xf32> -> vector<1x8xf32>
    %cst_12 = arith.constant 0.142857149 : f32
    %28 = vector.broadcast %cst_12 : f32 to vector<1x8xf32>
    %29 = arith.mulf %27, %28 : vector<1x8xf32>
    %c0_13 = arith.constant 0 : index
    %c0_14 = arith.constant 0 : index
    %30 = vector.load %arg3[%c0_13, %c0_14] : memref<24x32xf32, #tpu.memory_space<vmem>>, vector<24x32xf32>
    %cst_15 = arith.constant dense<0.000000e+00> : vector<1x32xf32>
    %31 = tpu.matmul %12, %30, %cst_15 {dimension_numbers = #tpu.dot_dimension_numbers<[1], [0], [0], [1], [0, 0, 1, 1], [], []>} : vector<1x24xf32>, vector<24x32xf32>, vector<1x32xf32> -> vector<1x32xf32>
    %c0_16 = arith.constant 0 : index
    %c0_17 = arith.constant 0 : index
    %32 = vector.load %arg4[%c0_16, %c0_17] : memref<8x32xf32, #tpu.memory_space<vmem>>, vector<8x32xf32>
    %cst_18 = arith.constant dense<0.000000e+00> : vector<1x32xf32>
    %33 = tpu.matmul %29, %32, %cst_18 {dimension_numbers = #tpu.dot_dimension_numbers<[1], [0], [0], [1], [0, 0, 1, 1], [], []>} : vector<1x8xf32>, vector<8x32xf32>, vector<1x32xf32> -> vector<1x32xf32>
    %34 = arith.addf %31, %33 : vector<1x32xf32>
    %c0_19 = arith.constant 0 : index
    %c0_20 = arith.constant 0 : index
    %35 = vector.load %arg5[%c0_19, %c0_20] : memref<24x32xf32, #tpu.memory_space<vmem>>, vector<24x32xf32>
    %cst_21 = arith.constant dense<0.000000e+00> : vector<1x32xf32>
    %36 = tpu.matmul %5, %35, %cst_21 {dimension_numbers = #tpu.dot_dimension_numbers<[1], [0], [0], [1], [0, 0, 1, 1], [], []>} : vector<1x24xf32>, vector<24x32xf32>, vector<1x32xf32> -> vector<1x32xf32>
    %37 = arith.addf %34, %36 : vector<1x32xf32>
    %c0_22 = arith.constant 0 : index
    %c0_23 = arith.constant 0 : index
    %38 = vector.load %arg6[%c0_22, %c0_23] : memref<8x32xf32, #tpu.memory_space<vmem>>, vector<8x32xf32>
    %cst_24 = arith.constant dense<0.000000e+00> : vector<1x32xf32>
    %39 = tpu.matmul %23, %38, %cst_24 {dimension_numbers = #tpu.dot_dimension_numbers<[1], [0], [0], [1], [0, 0, 1, 1], [], []>} : vector<1x8xf32>, vector<8x32xf32>, vector<1x32xf32> -> vector<1x32xf32>
    %40 = arith.addf %37, %39 : vector<1x32xf32>
    %c0_25 = arith.constant 0 : index
    %c0_26 = arith.constant 0 : index
    %41 = vector.load %arg7[%c0_25, %c0_26] : memref<1x32xf32, #tpu.memory_space<vmem>>, vector<1x32xf32>
    %42 = arith.addf %40, %41 : vector<1x32xf32>
    %cst_27 = arith.constant 0.000000e+00 : f32
    %43 = vector.broadcast %cst_27 : f32 to vector<1x32xf32>
    %44 = arith.cmpf ogt, %42, %43 : vector<1x32xf32>
    %cst_28 = arith.constant 0.00999999977 : f32
    %45 = vector.broadcast %cst_28 : f32 to vector<1x32xf32>
    %46 = arith.mulf %45, %42 : vector<1x32xf32>
    %47 = arith.select %44, %42, %46 : vector<1x32xi1>, vector<1x32xf32>
    %c0_29 = arith.constant 0 : index
    %c0_30 = arith.constant 0 : index
    %48 = vector.load %arg8[%c0_29, %c0_30] : memref<32x32xf32, #tpu.memory_space<vmem>>, vector<32x32xf32>
    %cst_31 = arith.constant dense<0.000000e+00> : vector<1x32xf32>
    %49 = tpu.matmul %47, %48, %cst_31 {dimension_numbers = #tpu.dot_dimension_numbers<[1], [0], [0], [1], [0, 0, 1, 1], [], []>} : vector<1x32xf32>, vector<32x32xf32>, vector<1x32xf32> -> vector<1x32xf32>
    %c0_32 = arith.constant 0 : index
    %c0_33 = arith.constant 0 : index
    %50 = vector.load %arg9[%c0_32, %c0_33] : memref<1x32xf32, #tpu.memory_space<vmem>>, vector<1x32xf32>
    %51 = arith.addf %49, %50 : vector<1x32xf32>
    %cst_34 = arith.constant 0.000000e+00 : f32
    %52 = vector.broadcast %cst_34 : f32 to vector<1x32xf32>
    %53 = arith.cmpf ogt, %51, %52 : vector<1x32xf32>
    %cst_35 = arith.constant 0.00999999977 : f32
    %54 = vector.broadcast %cst_35 : f32 to vector<1x32xf32>
    %55 = arith.mulf %54, %51 : vector<1x32xf32>
    %56 = arith.select %53, %51, %55 : vector<1x32xi1>, vector<1x32xf32>
    %c0_36 = arith.constant 0 : index
    %c0_37 = arith.constant 0 : index
    %57 = vector.load %arg10[%c0_36, %c0_37] : memref<32x16xf32, #tpu.memory_space<vmem>>, vector<32x16xf32>
    %cst_38 = arith.constant dense<0.000000e+00> : vector<1x16xf32>
    %58 = tpu.matmul %56, %57, %cst_38 {dimension_numbers = #tpu.dot_dimension_numbers<[1], [0], [0], [1], [0, 0, 1, 1], [], []>} : vector<1x32xf32>, vector<32x16xf32>, vector<1x16xf32> -> vector<1x16xf32>
    %c0_39 = arith.constant 0 : index
    %c0_40 = arith.constant 0 : index
    %59 = vector.load %arg11[%c0_39, %c0_40] : memref<1x16xf32, #tpu.memory_space<vmem>>, vector<1x16xf32>
    %60 = arith.addf %58, %59 : vector<1x16xf32>
    %c0_41 = arith.constant 0 : index
    %c0_42 = arith.constant 0 : index
    %61 = vector.load %arg12[%c0_41, %c0_42] : memref<16x16xf32, #tpu.memory_space<vmem>>, vector<16x16xf32>
    %cst_43 = arith.constant dense<0.000000e+00> : vector<1x16xf32>
    %62 = tpu.matmul %60, %61, %cst_43 {dimension_numbers = #tpu.dot_dimension_numbers<[1], [0], [0], [1], [0, 0, 1, 1], [], []>} : vector<1x16xf32>, vector<16x16xf32>, vector<1x16xf32> -> vector<1x16xf32>
    %c0_44 = arith.constant 0 : index
    %c0_45 = arith.constant 0 : index
    %63 = vector.load %arg13[%c0_44, %c0_45] : memref<1x16xf32, #tpu.memory_space<vmem>>, vector<1x16xf32>
    %64 = arith.addf %62, %63 : vector<1x16xf32>
    %c0_46 = arith.constant 0 : index
    %c0_47 = arith.constant 0 : index
    %65 = vector.load %arg14[%c0_46, %c0_47] : memref<1x16xf32, #tpu.memory_space<vmem>>, vector<1x16xf32>
    tpu.vector_store %arg14[%c0_46, %c0_47], %64 {strides = array<i32>} : memref<1x16xf32, #tpu.memory_space<vmem>>, vector<1x16xf32>,
    return
  }
}

</mosaic_0001>

<llo_original>
// kernel: task_encoder_forward.1
$region0: #{task_encoder_forward.1}
  #allocation0 [shape = 'u32[]', space=smem, size = 0x4, offset = 0x4, fixed_abs, tag = 'smem constant byte address 0x4 - core index']
  #allocation1 [shape = 'u32[144,128]{1,0:T(1,128)}', space=vmem, size = 0x12000, scoped, tag = 'internal scratch']
  %s0 = inlined_call_operand.vmem [shape: s32[8,1], index: 0, kind: input, shape index: {}]
  %s1 = inlined_call_operand.hbm [shape: f32[8,24], index: 1, kind: input, shape index: {}]
  %s2 = inlined_call_operand.hbm [shape: f32[5,8], index: 2, kind: input, shape index: {}]
  %s3 = inlined_call_operand.vmem [shape: f32[24,32], index: 3, kind: input, shape index: {}]
  %s4 = inlined_call_operand.hbm [shape: f32[8,32], index: 4, kind: input, shape index: {}]
  %s5 = inlined_call_operand.vmem [shape: f32[24,32], index: 5, kind: input, shape index: {}]
  %s6 = inlined_call_operand.hbm [shape: f32[8,32], index: 6, kind: input, shape index: {}]
  %s7 = inlined_call_operand.vmem [shape: f32[1,32], index: 7, kind: input, shape index: {}]
  %s8 = inlined_call_operand.vmem [shape: f32[32,32], index: 8, kind: input, shape index: {}]
  %s9 = inlined_call_operand.vmem [shape: f32[1,32], index: 9, kind: input, shape index: {}]
  %s10 = inlined_call_operand.vmem [shape: f32[32,16], index: 10, kind: input, shape index: {}]
  %s11 = inlined_call_operand.hbm [shape: f32[1,16], index: 11, kind: input, shape index: {}]
  %s12 = inlined_call_operand.hbm [shape: f32[16,16], index: 12, kind: input, shape index: {}]
  %s13 = inlined_call_operand.hbm [shape: f32[1,16], index: 13, kind: input, shape index: {}]
  %s14 = inlined_call_operand.hbm [shape: f32[1,16], index: 14, kind: output, shape index: {}]
  %s15 = sld [smem:[#allocation0]]
  $region94: #{task_encoder_forward.1} parent=0
    _
  %s17 = ssub.s32 1, %s15
  %s18 = scalar_select 0, %s17, %s15
  $region1: #{task_encoder_forward.1} parent=0
    #allocation2 [shape = 'u8[4096]{0}', space=vmem, size = 0x1000, scoped, tag = 'input window, operand 1, single buffered']
    #allocation3 [shape = 's32[1]{0}', space=sflag, size = 0x4, scoped, tag = 'scoped memory for task_encoder_forward.1']
    #allocation4 [shape = 's32[1]{0}', space=sflag, size = 0x4, scoped, tag = 'scoped memory for task_encoder_forward.1']
    #allocation5 [shape = 'u8[4096]{0}', space=vmem, size = 0x1000, scoped, tag = 'input window, operand 2, single buffered']
    #allocation6 [shape = 's32[1]{0}', space=sflag, size = 0x4, scoped, tag = 'scoped memory for task_encoder_forward.1']
    #allocation7 [shape = 'u8[4096]{0}', space=vmem, size = 0x1000, scoped, tag = 'input window, operand 4, single buffered']
    #allocation8 [shape = 'u8[4096]{0}', space=vmem, size = 0x1000, scoped, tag = 'input window, operand 6, single buffered']
    #allocation9 [shape = 's32[1]{0}', space=sflag, size = 0x4, scoped, tag = 'scoped memory for task_encoder_forward.1']
    #allocation10 [shape = 'u8[512]{0}', space=vmem, size = 0x400, scoped, tag = 'input window, operand 11, single buffered']
    #allocation11 [shape = 'u8[8192]{0}', space=vmem, size = 0x2000, scoped, tag = 'input window, operand 12, single buffered']
    #allocation12 [shape = 's32[1]{0}', space=sflag, size = 0x4, scoped, tag = 'scoped memory for task_encoder_forward.1']
    #allocation13 [shape = 'u8[512]{0}', space=vmem, size = 0x400, scoped, tag = 'input window, operand 13, single buffered']
    #allocation14 [shape = 'u8[512]{0}', space=vmem, size = 0x400, scoped, tag = 'output window, operand 0, single buffered']
    %19 = vsyncpa [#allocation3], 0
    %20 = vsyncpa [#allocation6], 0
    %21 = vsyncpa [#allocation9], 0
    %22 = vsyncpa [#allocation12], 0
    %23 = vsyncpa [#allocation4], 0
    // Predicated region
    $region2: #{task_encoder_forward.1} parent=1 // pred_check
      _
    $region3: #{task_encoder_forward.1} parent=1 // pred_check_branch
      %25 = sbr.rel (0) target = $region5
    $region4: #{task_encoder_forward.1} parent=1 // pred_region
      _
    $region5: #{task_encoder_forward.1} parent=1 // pred_fallthru
      _
    // Predicated region
    $region6: #{task_encoder_forward.1} parent=1 // pred_check
      _
    $region7: #{task_encoder_forward.1} parent=1 // pred_check_branch
      %27 = sbr.rel (0) target = $region9
    $region8: #{task_encoder_forward.1} parent=1 // pred_region
      %s29 = ssub.s32 128, 128
      %30 = vsyncadd [#allocation3], %s29
      %s32 = sshll.u32 [#allocation2], 4
      %s33 = int_to_ptr.vmem [resolvable:$true] %s32
      %35 = dma.hbm_to_vmem [thread:$0]  %s1, 128, %s33, [#allocation3]
    $region9: #{task_encoder_forward.1} parent=1 // pred_fallthru
      _
    // Predicated region
    $region10: #{task_encoder_forward.1} parent=1 // pred_check
      _
    $region11: #{task_encoder_forward.1} parent=1 // pred_check_branch
      %37 = sbr.rel (0) target = $region13
    $region12: #{task_encoder_forward.1} parent=1 // pred_region
      %s39 = ssub.s32 128, 128
      %40 = vsyncadd [#allocation6], %s39
      %s42 = sshll.u32 [#allocation5], 4
      %s43 = int_to_ptr.vmem [resolvable:$true] %s42
      %45 = dma.hbm_to_vmem [thread:$0]  %s2, 128, %s43, [#allocation6]
    $region13: #{task_encoder_forward.1} parent=1 // pred_fallthru
      _
    // Predicated region
    $region14: #{task_encoder_forward.1} parent=1 // pred_check
      _
    $region15: #{task_encoder_forward.1} parent=1 // pred_check_branch
      %47 = sbr.rel (0) target = $region17
    $region16: #{task_encoder_forward.1} parent=1 // pred_region
      _
    $region17: #{task_encoder_forward.1} parent=1 // pred_fallthru
      _
    // Predicated region
    $region18: #{task_encoder_forward.1} parent=1 // pred_check
      _
    $region19: #{task_encoder_forward.1} parent=1 // pred_check_branch
      %49 = sbr.rel (0) target = $region21
    $region20: #{task_encoder_forward.1} parent=1 // pred_region
      %s51 = ssub.s32 128, 128
      %52 = vsyncadd [#allocation6], %s51
      %s54 = sshll.u32 [#allocation7], 4
      %s55 = int_to_ptr.vmem [resolvable:$true] %s54
      %57 = dma.hbm_to_vmem [thread:$0]  %s4, 128, %s55, [#allocation6]
    $region21: #{task_encoder_forward.1} parent=1 // pred_fallthru
      _
    // Predicated region
    $region22: #{task_encoder_forward.1} parent=1 // pred_check
      _
    $region23: #{task_encoder_forward.1} parent=1 // pred_check_branch
      %59 = sbr.rel (0) target = $region25
    $region24: #{task_encoder_forward.1} parent=1 // pred_region
      _
    $region25: #{task_encoder_forward.1} parent=1 // pred_fallthru
      _
    // Predicated region
    $region26: #{task_encoder_forward.1} parent=1 // pred_check
      _
    $region27: #{task_encoder_forward.1} parent=1 // pred_check_branch
      %61 = sbr.rel (0) target = $region29
    $region28: #{task_encoder_forward.1} parent=1 // pred_region
      %s63 = ssub.s32 128, 128
      %64 = vsyncadd [#allocation9], %s63
      %s66 = sshll.u32 [#allocation8], 4
      %s67 = int_to_ptr.vmem [resolvable:$true] %s66
      %69 = dma.hbm_to_vmem [thread:$0]  %s6, 128, %s67, [#allocation9]
    $region29: #{task_encoder_forward.1} parent=1 // pred_fallthru
      _
    // Predicated region
    $region30: #{task_encoder_forward.1} parent=1 // pred_check
      _
    $region31: #{task_encoder_forward.1} parent=1 // pred_check_branch
      %71 = sbr.rel (0) target = $region33
    $region32: #{task_encoder_forward.1} parent=1 // pred_region
      _
    $region33: #{task_encoder_forward.1} parent=1 // pred_fallthru
      _
    // Predicated region
    $region34: #{task_encoder_forward.1} parent=1 // pred_check
      _
    $region35: #{task_encoder_forward.1} parent=1 // pred_check_branch
      %73 = sbr.rel (0) target = $region37
    $region36: #{task_encoder_forward.1} parent=1 // pred_region
      _
    $region37: #{task_encoder_forward.1} parent=1 // pred_fallthru
      _
    // Predicated region
    $region38: #{task_encoder_forward.1} parent=1 // pred_check
      _
    $region39: #{task_encoder_forward.1} parent=1 // pred_check_branch
      %75 = sbr.rel (0) target = $region41
    $region40: #{task_encoder_forward.1} parent=1 // pred_region
      _
    $region41: #{task_encoder_forward.1} parent=1 // pred_fallthru
      _
    // Predicated region
    $region42: #{task_encoder_forward.1} parent=1 // pred_check
      _
    $region43: #{task_encoder_forward.1} parent=1 // pred_check_branch
      %77 = sbr.rel (0) target = $region45
    $region44: #{task_encoder_forward.1} parent=1 // pred_region
      _
    $region45: #{task_encoder_forward.1} parent=1 // pred_fallthru
      _
    // Predicated region
    $region46: #{task_encoder_forward.1} parent=1 // pred_check
      _
    $region47: #{task_encoder_forward.1} parent=1 // pred_check_branch
      %79 = sbr.rel (0) target = $region49
    $region48: #{task_encoder_forward.1} parent=1 // pred_region
      %s81 = ssub.s32 16, 16
      %82 = vsyncadd [#allocation9], %s81
      %s84 = sshll.u32 [#allocation10], 4
      %s85 = int_to_ptr.vmem [resolvable:$true] %s84
      %87 = dma.hbm_to_vmem [thread:$0]  %s11, 16, %s85, [#allocation9]
    $region49: #{task_encoder_forward.1} parent=1 // pred_fallthru
      _
    // Predicated region
    $region50: #{task_encoder_forward.1} parent=1 // pred_check
      _
    $region51: #{task_encoder_forward.1} parent=1 // pred_check_branch
      %89 = sbr.rel (0) target = $region53
    $region52: #{task_encoder_forward.1} parent=1 // pred_region
      %s91 = ssub.s32 256, 256
      %92 = vsyncadd [#allocation12], %s91
      %s93 = sshll.u32 [#allocation11], 4
      %s94 = int_to_ptr.vmem [resolvable:$true] %s93
      %99 = dma.hbm_to_vmem [thread:$0]  %s12, 256, %s94, [#allocation12], 128, 128, 8
    $region53: #{task_encoder_forward.1} parent=1 // pred_fallthru
      _
    // Predicated region
    $region54: #{task_encoder_forward.1} parent=1 // pred_check
      _
    $region55: #{task_encoder_forward.1} parent=1 // pred_check_branch
      %101 = sbr.rel (0) target = $region57
    $region56: #{task_encoder_forward.1} parent=1 // pred_region
      %s103 = ssub.s32 16, 16
      %104 = vsyncadd [#allocation12], %s103
      %s106 = sshll.u32 [#allocation13], 4
      %s107 = int_to_ptr.vmem [resolvable:$true] %s106
      %109 = dma.hbm_to_vmem [thread:$0]  %s13, 16, %s107, [#allocation12]
    $region57: #{task_encoder_forward.1} parent=1 // pred_fallthru
      _
    // Predicated region
    $region58: #{task_encoder_forward.1} parent=1 // pred_check
      _
    $region59: #{task_encoder_forward.1} parent=1 // pred_check_branch
      %111 = sbr.rel (0) target = $region61
    $region60: #{task_encoder_forward.1} parent=1 // pred_region
      %112 = dma.done [#allocation3], 128
    $region61: #{task_encoder_forward.1} parent=1 // pred_fallthru
      _
    // Predicated region
    $region62: #{task_encoder_forward.1} parent=1 // pred_check
      _
    $region63: #{task_encoder_forward.1} parent=1 // pred_check_branch
      %114 = sbr.rel (0) target = $region65
    $region64: #{task_encoder_forward.1} parent=1 // pred_region
      %115 = dma.done [#allocation6], 128
    $region65: #{task_encoder_forward.1} parent=1 // pred_fallthru
      _
    // Predicated region
    $region66: #{task_encoder_forward.1} parent=1 // pred_check
      _
    $region67: #{task_encoder_forward.1} parent=1 // pred_check_branch
      %117 = sbr.rel (0) target = $region69
    $region68: #{task_encoder_forward.1} parent=1 // pred_region
      %118 = dma.done [#allocation6], 128
    $region69: #{task_encoder_forward.1} parent=1 // pred_fallthru
      _
    // Predicated region
    $region70: #{task_encoder_forward.1} parent=1 // pred_check
      _
    $region71: #{task_encoder_forward.1} parent=1 // pred_check_branch
      %120 = sbr.rel (0) target = $region73
    $region72: #{task_encoder_forward.1} parent=1 // pred_region
      %121 = dma.done [#allocation9], 128
    $region73: #{task_encoder_forward.1} parent=1 // pred_fallthru
      _
    // Predicated region
    $region74: #{task_encoder_forward.1} parent=1 // pred_check
      _
    $region75: #{task_encoder_forward.1} parent=1 // pred_check_branch
      %123 = sbr.rel (0) target = $region77
    $region76: #{task_encoder_forward.1} parent=1 // pred_region
      %124 = dma.done [#allocation9], 16
    $region77: #{task_encoder_forward.1} parent=1 // pred_fallthru
      _
    // Predicated region
    $region78: #{task_encoder_forward.1} parent=1 // pred_check
      _
    $region79: #{task_encoder_forward.1} parent=1 // pred_check_branch
      %126 = sbr.rel (0) target = $region81
    $region80: #{task_encoder_forward.1} parent=1 // pred_region
      %127 = dma.done [#allocation12], 256
    $region81: #{task_encoder_forward.1} parent=1 // pred_fallthru
      _
    // Predicated region
    $region82: #{task_encoder_forward.1} parent=1 // pred_check
      _
    $region83: #{task_encoder_forward.1} parent=1 // pred_check_branch
      %129 = sbr.rel (0) target = $region85
    $region84: #{task_encoder_forward.1} parent=1 // pred_region
      %130 = dma.done [#allocation12], 16
    $region85: #{task_encoder_forward.1} parent=1 // pred_fallthru
      _
    %v131 = vld [vmem:[#allocation2] sm:$0xff]
    %v132 = vld [vmem:[#allocation5] sm:$0x1f]
    %vm133 = vcmask 195584
    %v134 = vsel %vm133, %v131, 0.0
    %v135 = vrot.slane %v134, 4
    %v136 = vadd.f32 %v134, %v135
    %v137 = vrot.slane %v136, 2
    %v138 = vadd.f32 %v136, %v137
    %v139 = vrot.slane %v138, 1
    %v140 = vadd.f32 %v138, %v139
    %v141 = vmul.f32 %v140, 0.125
    %v142 = vsub.f32 %v131, %v141
    %v143 = vmul.f32 %v142, %v142
    %v144 = vsel %vm133, %v143, 0.0
    %v145 = vrot.slane %v144, 4
    %v146 = vadd.f32 %v144, %v145
    %v147 = vrot.slane %v146, 2
    %v148 = vadd.f32 %v146, %v147
    %v149 = vrot.slane %v148, 1
    %v150 = vadd.f32 %v148, %v149
    %v151 = vmul.f32 %v150, 0.14285715
    %v152 = vld [vmem:[%s0] sm:$0xff]
    %v153 = vlaneseq
    %v154 = vand.u32 %v153, 127
    %155 = vset.pattern.permute.xlu0 0
    %156 = vperm.xlu0 %155, %v152
    %v157 = vpop.permute.xlu0 %156
    %vm158 = vcmp.eq.s32.totalorder %v157, %v154
    %v159 = vsel %vm158, 1, 0
    %v160 = vcvt.s32.f32 %v159
    %vm161 = vcmask 39936
    %v162 = vsel %vm161, %v160, 0.0
    %v163 = vrot.slane %v162, 4
    %v164 = vadd.f32 %v162, %v163
    %v165 = vrot.slane %v164, 2
    %v166 = vadd.f32 %v164, %v165
    %v167 = vrot.slane %v166, 1
    %v168 = vadd.f32 %v166, %v167
    %v170 = vsel %vm161, %v168, 0
    %vm172 = vcmask 1044480
    %v174 = vsel %vm172, %v132, 0
    %176 = vmatprep.subr.mxu0 0.0
    %177 = vmatpush1.msra.mxu0 %v174
    %178 = vmatprep.subr.mxu0 0.0
    %179 = vmatpush1.msra.mxu0 0.0
    %180 = vmatprep.subr.mxu0 0.0
    %181 = vmatpush1.msra.mxu0 0.0
    %182 = vmatprep.subr.mxu0 0.0
    %183 = vmatpush1.msra.mxu0 0.0
    %184 = vmatprep.subr.mxu0 0.0
    %185 = vmatpush1.msra.mxu0 0.0
    %186 = vmatprep.subr.mxu0 0.0
    %187 = vmatpush1.msra.mxu0 0.0
    %188 = vmatprep.subr.mxu0 0.0
    %189 = vmatpush1.msra.mxu0 0.0
    %190 = vmatprep.subr.mxu0 0.0
    %191 = vmatpush1.msra.mxu0 0.0
    %192 = vmatprep.subr.mxu0 0.0
    %193 = vmatpush1.msra.mxu0 0.0
    %194 = vmatprep.subr.mxu0 0.0
    %195 = vmatpush1.msra.mxu0 0.0
    %196 = vmatprep.subr.mxu0 0.0
    %197 = vmatpush1.msra.mxu0 0.0
    %198 = vmatprep.subr.mxu0 0.0
    %199 = vmatpush1.msra.mxu0 0.0
    %200 = vmatprep.subr.mxu0 0.0
    %201 = vmatpush1.msra.mxu0 0.0
    %202 = vmatprep.subr.mxu0 0.0
    %203 = vmatpush1.msra.mxu0 0.0
    %204 = vmatprep.subr.mxu0 0.0
    %205 = vmatpush1.msra.mxu0 0.0
    %206 = vmatprep.subr.mxu0 0.0
    %207 = vmatpush1.msra.mxu0 0.0
    %208 = vmatprep.subr.mxu0 0.0
    %209 = vmatpush1.msra.mxu0 0.0
    %210 = vmatprep.subr.mxu0 0.0
    %211 = vmatpush1.msra.mxu0 0.0
    %212 = vmatprep.subr.mxu0 0.0
    %213 = vmatpush1.msra.mxu0 0.0
    %214 = vmatprep.subr.mxu0 0.0
    %215 = vmatpush1.msra.mxu0 0.0
    %216 = vmatprep.subr.mxu0 0.0
    %217 = vmatpush1.msra.mxu0 0.0
    %218 = vmatprep.subr.mxu0 0.0
    %219 = vmatpush1.msra.mxu0 0.0
    %220 = vmatprep.subr.mxu0 0.0
    %221 = vmatpush1.msra.mxu0 0.0
    %222 = vmatprep.subr.mxu0 0.0
    %223 = vmatpush1.msra.mxu0 0.0
    %224 = vmatprep.subr.mxu0 0.0
    %225 = vmatpush1.msra.mxu0 0.0
    %226 = vmatprep.subr.mxu0 0.0
    %227 = vmatpush1.msra.mxu0 0.0
    %228 = vmatprep.subr.mxu0 0.0
    %229 = vmatpush1.msra.mxu0 0.0
    %230 = vmatprep.subr.mxu0 0.0
    %231 = vmatpush1.msra.mxu0 0.0
    %232 = vmatprep.subr.mxu0 0.0
    %233 = vmatpush1.msra.mxu0 0.0
    %234 = vmatprep.subr.mxu0 0.0
    %235 = vmatpush1.msra.mxu0 0.0
    %236 = vmatprep.subr.mxu0 0.0
    %237 = vmatpush1.msra.mxu0 0.0
    %238 = vmatprep.subr.mxu0 0.0
    %239 = vmatpush1.msra.mxu0 0.0
    %240 = vmatprep.mubr.f32.mxu0 0.0
    %241 = vmatmul.mubr.f32.gmra.mrb[0].mxu0 %v170
    %v242 = vpop.f32.mrb[0].mxu0
    %v243 = vadd.f32 0.0, %v242
    %v244 = vpop.f32.mrb[0].mxu0
    %245 = vdwg.mxu0
    %v246 = vmul.f32 %v243, 0.125
    %v247 = vlaneseq
    %v248 = vshrl.u32 %v247, 7
    %v249 = vsub.s32 0, %v248
    %v250 = vrot.slane %v246, %v249
    %v251 = vsub.f32 %v132, %v250
    %v252 = vmul.f32 %v251, %v251
    %v254 = vsel %vm172, %v252, 0
    %256 = vmatprep.subr.mxu0 0.0
    %257 = vmatpush1.msra.mxu0 %v254
    %258 = vmatprep.subr.mxu0 0.0
    %259 = vmatpush1.msra.mxu0 0.0
    %260 = vmatprep.subr.mxu0 0.0
    %261 = vmatpush1.msra.mxu0 0.0
    %262 = vmatprep.subr.mxu0 0.0
    %263 = vmatpush1.msra.mxu0 0.0
    %264 = vmatprep.subr.mxu0 0.0
    %265 = vmatpush1.msra.mxu0 0.0
    %266 = vmatprep.subr.mxu0 0.0
    %267 = vmatpush1.msra.mxu0 0.0
    %268 = vmatprep.subr.mxu0 0.0
    %269 = vmatpush1.msra.mxu0 0.0
    %270 = vmatprep.subr.mxu0 0.0
    %271 = vmatpush1.msra.mxu0 0.0
    %272 = vmatprep.subr.mxu0 0.0
    %273 = vmatpush1.msra.mxu0 0.0
    %274 = vmatprep.subr.mxu0 0.0
    %275 = vmatpush1.msra.mxu0 0.0
    %276 = vmatprep.subr.mxu0 0.0
    %277 = vmatpush1.msra.mxu0 0.0
    %278 = vmatprep.subr.mxu0 0.0
    %279 = vmatpush1.msra.mxu0 0.0
    %280 = vmatprep.subr.mxu0 0.0
    %281 = vmatpush1.msra.mxu0 0.0
    %282 = vmatprep.subr.mxu0 0.0
    %283 = vmatpush1.msra.mxu0 0.0
    %284 = vmatprep.subr.mxu0 0.0
    %285 = vmatpush1.msra.mxu0 0.0
    %286 = vmatprep.subr.mxu0 0.0
    %287 = vmatpush1.msra.mxu0 0.0
    %288 = vmatprep.subr.mxu0 0.0
    %289 = vmatpush1.msra.mxu0 0.0
    %290 = vmatprep.subr.mxu0 0.0
    %291 = vmatpush1.msra.mxu0 0.0
    %292 = vmatprep.subr.mxu0 0.0
    %293 = vmatpush1.msra.mxu0 0.0
    %294 = vmatprep.subr.mxu0 0.0
    %295 = vmatpush1.msra.mxu0 0.0
    %296 = vmatprep.subr.mxu0 0.0
    %297 = vmatpush1.msra.mxu0 0.0
    %298 = vmatprep.subr.mxu0 0.0
    %299 = vmatpush1.msra.mxu0 0.0
    %300 = vmatprep.subr.mxu0 0.0
    %301 = vmatpush1.msra.mxu0 0.0
    %302 = vmatprep.subr.mxu0 0.0
    %303 = vmatpush1.msra.mxu0 0.0
    %304 = vmatprep.subr.mxu0 0.0
    %305 = vmatpush1.msra.mxu0 0.0
    %306 = vmatprep.subr.mxu0 0.0
    %307 = vmatpush1.msra.mxu0 0.0
    %308 = vmatprep.subr.mxu0 0.0
    %309 = vmatpush1.msra.mxu0 0.0
    %310 = vmatprep.subr.mxu0 0.0
    %311 = vmatpush1.msra.mxu0 0.0
    %312 = vmatprep.subr.mxu0 0.0
    %313 = vmatpush1.msra.mxu0 0.0
    %314 = vmatprep.subr.mxu0 0.0
    %315 = vmatpush1.msra.mxu0 0.0
    %316 = vmatprep.subr.mxu0 0.0
    %317 = vmatpush1.msra.mxu0 0.0
    %318 = vmatprep.subr.mxu0 0.0
    %319 = vmatpush1.msra.mxu0 0.0
    %320 = vmatprep.mubr.f32.mxu0 0.0
    %321 = vmatmul.mubr.f32.gmra.mrb[0].mxu0 %v170
    %v322 = vpop.f32.mrb[0].mxu0
    %v323 = vadd.f32 0.0, %v322
    %v324 = vpop.f32.mrb[0].mxu0
    %325 = vdwg.mxu0
    %v326 = vmul.f32 %v323, 0.14285715
    %v327 = vld [vmem:[%s3] sm:$0xff]
    %v328 = vld [vmem:[%s3 + $0x8] sm:$0xff]
    %v329 = vld [vmem:[%s3 + $0x10] sm:$0xff]
    %v330 = vld [vmem:[#allocation7] sm:$0xff]
    %vm331 = vcmask 64512
    %v333 = vsel %vm331, %v326, 0
    %335 = vmatprep.subr.mxu0 0.0
    %336 = vmatpush1.msra.mxu0 %v330
    %337 = vmatprep.subr.mxu0 0.0
    %338 = vmatpush1.msra.mxu0 0.0
    %339 = vmatprep.subr.mxu0 0.0
    %340 = vmatpush1.msra.mxu0 0.0
    %341 = vmatprep.subr.mxu0 0.0
    %342 = vmatpush1.msra.mxu0 0.0
    %343 = vmatprep.subr.mxu0 0.0
    %344 = vmatpush1.msra.mxu0 0.0
    %345 = vmatprep.subr.mxu0 0.0
    %346 = vmatpush1.msra.mxu0 0.0
    %347 = vmatprep.subr.mxu0 0.0
    %348 = vmatpush1.msra.mxu0 0.0
    %349 = vmatprep.subr.mxu0 0.0
    %350 = vmatpush1.msra.mxu0 0.0
    %351 = vmatprep.subr.mxu0 0.0
    %352 = vmatpush1.msra.mxu0 0.0
    %353 = vmatprep.subr.mxu0 0.0
    %354 = vmatpush1.msra.mxu0 0.0
    %355 = vmatprep.subr.mxu0 0.0
    %356 = vmatpush1.msra.mxu0 0.0
    %357 = vmatprep.subr.mxu0 0.0
    %358 = vmatpush1.msra.mxu0 0.0
    %359 = vmatprep.subr.mxu0 0.0
    %360 = vmatpush1.msra.mxu0 0.0
    %361 = vmatprep.subr.mxu0 0.0
    %362 = vmatpush1.msra.mxu0 0.0
    %363 = vmatprep.subr.mxu0 0.0
    %364 = vmatpush1.msra.mxu0 0.0
    %365 = vmatprep.subr.mxu0 0.0
    %366 = vmatpush1.msra.mxu0 0.0
    %367 = vmatprep.subr.mxu0 0.0
    %368 = vmatpush1.msra.mxu0 0.0
    %369 = vmatprep.subr.mxu0 0.0
    %370 = vmatpush1.msra.mxu0 0.0
    %371 = vmatprep.subr.mxu0 0.0
    %372 = vmatpush1.msra.mxu0 0.0
    %373 = vmatprep.subr.mxu0 0.0
    %374 = vmatpush1.msra.mxu0 0.0
    %375 = vmatprep.subr.mxu0 0.0
    %376 = vmatpush1.msra.mxu0 0.0
    %377 = vmatprep.subr.mxu0 0.0
    %378 = vmatpush1.msra.mxu0 0.0
    %379 = vmatprep.subr.mxu0 0.0
    %380 = vmatpush1.msra.mxu0 0.0
    %381 = vmatprep.subr.mxu0 0.0
    %382 = vmatpush1.msra.mxu0 0.0
    %383 = vmatprep.subr.mxu0 0.0
    %384 = vmatpush1.msra.mxu0 0.0
    %385 = vmatprep.subr.mxu0 0.0
    %386 = vmatpush1.msra.mxu0 0.0
    %387 = vmatprep.subr.mxu0 0.0
    %388 = vmatpush1.msra.mxu0 0.0
    %389 = vmatprep.subr.mxu0 0.0
    %390 = vmatpush1.msra.mxu0 0.0
    %391 = vmatprep.subr.mxu0 0.0
    %392 = vmatpush1.msra.mxu0 0.0
    %393 = vmatprep.subr.mxu0 0.0
    %394 = vmatpush1.msra.mxu0 0.0
    %395 = vmatprep.subr.mxu0 0.0
    %396 = vmatpush1.msra.mxu0 0.0
    %397 = vmatprep.subr.mxu0 0.0
    %398 = vmatpush1.msra.mxu0 0.0
    %399 = vmatprep.mubr.f32.mxu0 0.0
    %400 = vmatmul.mubr.f32.gmra.mrb[0].mxu0 %v333
    %v401 = vpop.f32.mrb[0].mxu0
    %v402 = vadd.f32 0.0, %v401
    %v403 = vpop.f32.mrb[0].mxu0
    %404 = vdwg.mxu0
    %v406 = vsel %vm133, %v151, 0
    %408 = vmatprep.subr.mxu0 0.0
    %409 = vmatpush1.msra.mxu0 %v327
    %410 = vmatprep.subr.mxu0 0.0
    %411 = vmatpush1.msra.mxu0 %v328
    %412 = vmatprep.subr.mxu0 0.0
    %413 = vmatpush1.msra.mxu0 %v329
    %414 = vmatprep.subr.mxu0 0.0
    %415 = vmatpush1.msra.mxu0 0.0
    %416 = vmatprep.subr.mxu0 0.0
    %417 = vmatpush1.msra.mxu0 0.0
    %418 = vmatprep.subr.mxu0 0.0
    %419 = vmatpush1.msra.mxu0 0.0
    %420 = vmatprep.subr.mxu0 0.0
    %421 = vmatpush1.msra.mxu0 0.0
    %422 = vmatprep.subr.mxu0 0.0
    %423 = vmatpush1.msra.mxu0 0.0
    %424 = vmatprep.subr.mxu0 0.0
    %425 = vmatpush1.msra.mxu0 0.0
    %426 = vmatprep.subr.mxu0 0.0
    %427 = vmatpush1.msra.mxu0 0.0
    %428 = vmatprep.subr.mxu0 0.0
    %429 = vmatpush1.msra.mxu0 0.0
    %430 = vmatprep.subr.mxu0 0.0
    %431 = vmatpush1.msra.mxu0 0.0
    %432 = vmatprep.subr.mxu0 0.0
    %433 = vmatpush1.msra.mxu0 0.0
    %434 = vmatprep.subr.mxu0 0.0
    %435 = vmatpush1.msra.mxu0 0.0
    %436 = vmatprep.subr.mxu0 0.0
    %437 = vmatpush1.msra.mxu0 0.0
    %438 = vmatprep.subr.mxu0 0.0
    %439 = vmatpush1.msra.mxu0 0.0
    %440 = vmatprep.subr.mxu0 0.0
    %441 = vmatpush1.msra.mxu0 0.0
    %442 = vmatprep.subr.mxu0 0.0
    %443 = vmatpush1.msra.mxu0 0.0
    %444 = vmatprep.subr.mxu0 0.0
    %445 = vmatpush1.msra.mxu0 0.0
    %446 = vmatprep.subr.mxu0 0.0
    %447 = vmatpush1.msra.mxu0 0.0
    %448 = vmatprep.subr.mxu0 0.0
    %449 = vmatpush1.msra.mxu0 0.0
    %450 = vmatprep.subr.mxu0 0.0
    %451 = vmatpush1.msra.mxu0 0.0
    %452 = vmatprep.subr.mxu0 0.0
    %453 = vmatpush1.msra.mxu0 0.0
    %454 = vmatprep.subr.mxu0 0.0
    %455 = vmatpush1.msra.mxu0 0.0
    %456 = vmatprep.subr.mxu0 0.0
    %457 = vmatpush1.msra.mxu0 0.0
    %458 = vmatprep.subr.mxu0 0.0
    %459 = vmatpush1.msra.mxu0 0.0
    %460 = vmatprep.subr.mxu0 0.0
    %461 = vmatpush1.msra.mxu0 0.0
    %462 = vmatprep.subr.mxu0 0.0
    %463 = vmatpush1.msra.mxu0 0.0
    %464 = vmatprep.subr.mxu0 0.0
    %465 = vmatpush1.msra.mxu0 0.0
    %466 = vmatprep.subr.mxu0 0.0
    %467 = vmatpush1.msra.mxu0 0.0
    %468 = vmatprep.subr.mxu0 0.0
    %469 = vmatpush1.msra.mxu0 0.0
    %470 = vmatprep.subr.mxu0 0.0
    %471 = vmatpush1.msra.mxu0 0.0
    %472 = vmatprep.mubr.f32.mxu0 0.0
    %473 = vmatmul.mubr.f32.gmra.mrb[0].mxu0 %v406
    %v474 = vpop.f32.mrb[0].mxu0
    %v475 = vadd.f32 %v402, %v474
    %v476 = vpop.f32.mrb[0].mxu0
    %477 = vdwg.mxu0
    %v478 = vld [vmem:[%s5] sm:$0xff]
    %v479 = vld [vmem:[%s5 + $0x8] sm:$0xff]
    %v480 = vld [vmem:[%s5 + $0x10] sm:$0xff]
    %v482 = vsel %vm133, %v141, 0
    %484 = vmatprep.subr.mxu0 0.0
    %485 = vmatpush1.msra.mxu0 %v478
    %486 = vmatprep.subr.mxu0 0.0
    %487 = vmatpush1.msra.mxu0 %v479
    %488 = vmatprep.subr.mxu0 0.0
    %489 = vmatpush1.msra.mxu0 %v480
    %490 = vmatprep.subr.mxu0 0.0
    %491 = vmatpush1.msra.mxu0 0.0
    %492 = vmatprep.subr.mxu0 0.0
    %493 = vmatpush1.msra.mxu0 0.0
    %494 = vmatprep.subr.mxu0 0.0
    %495 = vmatpush1.msra.mxu0 0.0
    %496 = vmatprep.subr.mxu0 0.0
    %497 = vmatpush1.msra.mxu0 0.0
    %498 = vmatprep.subr.mxu0 0.0
    %499 = vmatpush1.msra.mxu0 0.0
    %500 = vmatprep.subr.mxu0 0.0
    %501 = vmatpush1.msra.mxu0 0.0
    %502 = vmatprep.subr.mxu0 0.0
    %503 = vmatpush1.msra.mxu0 0.0
    %504 = vmatprep.subr.mxu0 0.0
    %505 = vmatpush1.msra.mxu0 0.0
    %506 = vmatprep.subr.mxu0 0.0
    %507 = vmatpush1.msra.mxu0 0.0
    %508 = vmatprep.subr.mxu0 0.0
    %509 = vmatpush1.msra.mxu0 0.0
    %510 = vmatprep.subr.mxu0 0.0
    %511 = vmatpush1.msra.mxu0 0.0
    %512 = vmatprep.subr.mxu0 0.0
    %513 = vmatpush1.msra.mxu0 0.0
    %514 = vmatprep.subr.mxu0 0.0
    %515 = vmatpush1.msra.mxu0 0.0
    %516 = vmatprep.subr.mxu0 0.0
    %517 = vmatpush1.msra.mxu0 0.0
    %518 = vmatprep.subr.mxu0 0.0
    %519 = vmatpush1.msra.mxu0 0.0
    %520 = vmatprep.subr.mxu0 0.0
    %521 = vmatpush1.msra.mxu0 0.0
    %522 = vmatprep.subr.mxu0 0.0
    %523 = vmatpush1.msra.mxu0 0.0
    %524 = vmatprep.subr.mxu0 0.0
    %525 = vmatpush1.msra.mxu0 0.0
    %526 = vmatprep.subr.mxu0 0.0
    %527 = vmatpush1.msra.mxu0 0.0
    %528 = vmatprep.subr.mxu0 0.0
    %529 = vmatpush1.msra.mxu0 0.0
    %530 = vmatprep.subr.mxu0 0.0
    %531 = vmatpush1.msra.mxu0 0.0
    %532 = vmatprep.subr.mxu0 0.0
    %533 = vmatpush1.msra.mxu0 0.0
    %534 = vmatprep.subr.mxu0 0.0
    %535 = vmatpush1.msra.mxu0 0.0
    %536 = vmatprep.subr.mxu0 0.0
    %537 = vmatpush1.msra.mxu0 0.0
    %538 = vmatprep.subr.mxu0 0.0
    %539 = vmatpush1.msra.mxu0 0.0
    %540 = vmatprep.subr.mxu0 0.0
    %541 = vmatpush1.msra.mxu0 0.0
    %542 = vmatprep.subr.mxu0 0.0
    %543 = vmatpush1.msra.mxu0 0.0
    %544 = vmatprep.subr.mxu0 0.0
    %545 = vmatpush1.msra.mxu0 0.0
    %546 = vmatprep.subr.mxu0 0.0
    %547 = vmatpush1.msra.mxu0 0.0
    %548 = vmatprep.mubr.f32.mxu0 0.0
    %549 = vmatmul.mubr.f32.gmra.mrb[0].mxu0 %v482
    %v550 = vpop.f32.mrb[0].mxu0
    %v551 = vadd.f32 0.0, %v550
    %v552 = vpop.f32.mrb[0].mxu0
    %553 = vdwg.mxu0
    %v554 = vadd.f32 %v475, %v551
    %v555 = vld [vmem:[#allocation8] sm:$0xff]
    %v557 = vsel %vm331, %v246, 0
    %559 = vmatprep.subr.mxu0 0.0
    %560 = vmatpush1.msra.mxu0 %v555
    %561 = vmatprep.subr.mxu0 0.0
    %562 = vmatpush1.msra.mxu0 0.0
    %563 = vmatprep.subr.mxu0 0.0
    %564 = vmatpush1.msra.mxu0 0.0
    %565 = vmatprep.subr.mxu0 0.0
    %566 = vmatpush1.msra.mxu0 0.0
    %567 = vmatprep.subr.mxu0 0.0
    %568 = vmatpush1.msra.mxu0 0.0
    %569 = vmatprep.subr.mxu0 0.0
    %570 = vmatpush1.msra.mxu0 0.0
    %571 = vmatprep.subr.mxu0 0.0
    %572 = vmatpush1.msra.mxu0 0.0
    %573 = vmatprep.subr.mxu0 0.0
    %574 = vmatpush1.msra.mxu0 0.0
    %575 = vmatprep.subr.mxu0 0.0
    %576 = vmatpush1.msra.mxu0 0.0
    %577 = vmatprep.subr.mxu0 0.0
    %578 = vmatpush1.msra.mxu0 0.0
    %579 = vmatprep.subr.mxu0 0.0
    %580 = vmatpush1.msra.mxu0 0.0
    %581 = vmatprep.subr.mxu0 0.0
    %582 = vmatpush1.msra.mxu0 0.0
    %583 = vmatprep.subr.mxu0 0.0
    %584 = vmatpush1.msra.mxu0 0.0
    %585 = vmatprep.subr.mxu0 0.0
    %586 = vmatpush1.msra.mxu0 0.0
    %587 = vmatprep.subr.mxu0 0.0
    %588 = vmatpush1.msra.mxu0 0.0
    %589 = vmatprep.subr.mxu0 0.0
    %590 = vmatpush1.msra.mxu0 0.0
    %591 = vmatprep.subr.mxu0 0.0
    %592 = vmatpush1.msra.mxu0 0.0
    %593 = vmatprep.subr.mxu0 0.0
    %594 = vmatpush1.msra.mxu0 0.0
    %595 = vmatprep.subr.mxu0 0.0
    %596 = vmatpush1.msra.mxu0 0.0
    %597 = vmatprep.subr.mxu0 0.0
    %598 = vmatpush1.msra.mxu0 0.0
    %599 = vmatprep.subr.mxu0 0.0
    %600 = vmatpush1.msra.mxu0 0.0
    %601 = vmatprep.subr.mxu0 0.0
    %602 = vmatpush1.msra.mxu0 0.0
    %603 = vmatprep.subr.mxu0 0.0
    %604 = vmatpush1.msra.mxu0 0.0
    %605 = vmatprep.subr.mxu0 0.0
    %606 = vmatpush1.msra.mxu0 0.0
    %607 = vmatprep.subr.mxu0 0.0
    %608 = vmatpush1.msra.mxu0 0.0
    %609 = vmatprep.subr.mxu0 0.0
    %610 = vmatpush1.msra.mxu0 0.0
    %611 = vmatprep.subr.mxu0 0.0
    %612 = vmatpush1.msra.mxu0 0.0
    %613 = vmatprep.subr.mxu0 0.0
    %614 = vmatpush1.msra.mxu0 0.0
    %615 = vmatprep.subr.mxu0 0.0
    %616 = vmatpush1.msra.mxu0 0.0
    %617 = vmatprep.subr.mxu0 0.0
    %618 = vmatpush1.msra.mxu0 0.0
    %619 = vmatprep.subr.mxu0 0.0
    %620 = vmatpush1.msra.mxu0 0.0
    %621 = vmatprep.subr.mxu0 0.0
    %622 = vmatpush1.msra.mxu0 0.0
    %623 = vmatprep.mubr.f32.mxu0 0.0
    %624 = vmatmul.mubr.f32.gmra.mrb[0].mxu0 %v557
    %v625 = vpop.f32.mrb[0].mxu0
    %v626 = vadd.f32 0.0, %v625
    %v627 = vpop.f32.mrb[0].mxu0
    %628 = vdwg.mxu0
    %v629 = vadd.f32 %v554, %v626
    %v630 = vld [vmem:[%s7] sm:$0x1]
    %v631 = vadd.f32 %v629, %v630
    %vm632 = vcmp.gt.f32.partialorder %v631, 0.0
    %v633 = vmul.f32 %v631, 0.01
    %v634 = vsel %vm632, %v631, %v633
    %v635 = vld [vmem:[%s8] sm:$0xff]
    %v636 = vld [vmem:[%s8 + $0x8] sm:$0xff]
    %v637 = vld [vmem:[%s8 + $0x10] sm:$0xff]
    %v638 = vld [vmem:[%s8 + $0x18] sm:$0xff]
    %v639 = vld [vmem:[%s9] sm:$0x1]
    %vm640 = vcmask 261120
    %v642 = vsel %vm640, %v634, 0
    %644 = vmatprep.subr.mxu0 0.0
    %645 = vmatpush1.msra.mxu0 %v635
    %646 = vmatprep.subr.mxu0 0.0
    %647 = vmatpush1.msra.mxu0 %v636
    %648 = vmatprep.subr.mxu0 0.0
    %649 = vmatpush1.msra.mxu0 %v637
    %650 = vmatprep.subr.mxu0 0.0
    %651 = vmatpush1.msra.mxu0 %v638
    %652 = vmatprep.subr.mxu0 0.0
    %653 = vmatpush1.msra.mxu0 0.0
    %654 = vmatprep.subr.mxu0 0.0
    %655 = vmatpush1.msra.mxu0 0.0
    %656 = vmatprep.subr.mxu0 0.0
    %657 = vmatpush1.msra.mxu0 0.0
    %658 = vmatprep.subr.mxu0 0.0
    %659 = vmatpush1.msra.mxu0 0.0
    %660 = vmatprep.subr.mxu0 0.0
    %661 = vmatpush1.msra.mxu0 0.0
    %662 = vmatprep.subr.mxu0 0.0
    %663 = vmatpush1.msra.mxu0 0.0
    %664 = vmatprep.subr.mxu0 0.0
    %665 = vmatpush1.msra.mxu0 0.0
    %666 = vmatprep.subr.mxu0 0.0
    %667 = vmatpush1.msra.mxu0 0.0
    %668 = vmatprep.subr.mxu0 0.0
    %669 = vmatpush1.msra.mxu0 0.0
    %670 = vmatprep.subr.mxu0 0.0
    %671 = vmatpush1.msra.mxu0 0.0
    %672 = vmatprep.subr.mxu0 0.0
    %673 = vmatpush1.msra.mxu0 0.0
    %674 = vmatprep.subr.mxu0 0.0
    %675 = vmatpush1.msra.mxu0 0.0
    %676 = vmatprep.subr.mxu0 0.0
    %677 = vmatpush1.msra.mxu0 0.0
    %678 = vmatprep.subr.mxu0 0.0
    %679 = vmatpush1.msra.mxu0 0.0
    %680 = vmatprep.subr.mxu0 0.0
    %681 = vmatpush1.msra.mxu0 0.0
    %682 = vmatprep.subr.mxu0 0.0
    %683 = vmatpush1.msra.mxu0 0.0
    %684 = vmatprep.subr.mxu0 0.0
    %685 = vmatpush1.msra.mxu0 0.0
    %686 = vmatprep.subr.mxu0 0.0
    %687 = vmatpush1.msra.mxu0 0.0
    %688 = vmatprep.subr.mxu0 0.0
    %689 = vmatpush1.msra.mxu0 0.0
    %690 = vmatprep.subr.mxu0 0.0
    %691 = vmatpush1.msra.mxu0 0.0
    %692 = vmatprep.subr.mxu0 0.0
    %693 = vmatpush1.msra.mxu0 0.0
    %694 = vmatprep.subr.mxu0 0.0
    %695 = vmatpush1.msra.mxu0 0.0
    %696 = vmatprep.subr.mxu0 0.0
    %697 = vmatpush1.msra.mxu0 0.0
    %698 = vmatprep.subr.mxu0 0.0
    %699 = vmatpush1.msra.mxu0 0.0
    %700 = vmatprep.subr.mxu0 0.0
    %701 = vmatpush1.msra.mxu0 0.0
    %702 = vmatprep.subr.mxu0 0.0
    %703 = vmatpush1.msra.mxu0 0.0
    %704 = vmatprep.subr.mxu0 0.0
    %705 = vmatpush1.msra.mxu0 0.0
    %706 = vmatprep.subr.mxu0 0.0
    %707 = vmatpush1.msra.mxu0 0.0
    %708 = vmatprep.mubr.f32.mxu0 0.0
    %709 = vmatmul.mubr.f32.gmra.mrb[0].mxu0 %v642
    %v710 = vpop.f32.mrb[0].mxu0
    %v711 = vadd.f32 %v639, %v710
    %v712 = vpop.f32.mrb[0].mxu0
    %713 = vdwg.mxu0
    %vm714 = vcmp.gt.f32.partialorder %v711, 0.0
    %v715 = vmul.f32 %v711, 0.01
    %v716 = vsel %vm714, %v711, %v715
    %v717 = vld [vmem:[%s10] sm:$0xff]
    %v718 = vld [vmem:[%s10 + $0x8] sm:$0xff]
    %v719 = vld [vmem:[%s10 + $0x10] sm:$0xff]
    %v720 = vld [vmem:[%s10 + $0x18] sm:$0xff]
    %v721 = vld [vmem:[#allocation10] sm:$0x1]
    %v723 = vsel %vm640, %v716, 0
    %725 = vmatprep.subr.mxu0 0.0
    %726 = vmatpush1.msra.mxu0 %v717
    %727 = vmatprep.subr.mxu0 0.0
    %728 = vmatpush1.msra.mxu0 %v718
    %729 = vmatprep.subr.mxu0 0.0
    %730 = vmatpush1.msra.mxu0 %v719
    %731 = vmatprep.subr.mxu0 0.0
    %732 = vmatpush1.msra.mxu0 %v720
    %733 = vmatprep.subr.mxu0 0.0
    %734 = vmatpush1.msra.mxu0 0.0
    %735 = vmatprep.subr.mxu0 0.0
    %736 = vmatpush1.msra.mxu0 0.0
    %737 = vmatprep.subr.mxu0 0.0
    %738 = vmatpush1.msra.mxu0 0.0
    %739 = vmatprep.subr.mxu0 0.0
    %740 = vmatpush1.msra.mxu0 0.0
    %741 = vmatprep.subr.mxu0 0.0
    %742 = vmatpush1.msra.mxu0 0.0
    %743 = vmatprep.subr.mxu0 0.0
    %744 = vmatpush1.msra.mxu0 0.0
    %745 = vmatprep.subr.mxu0 0.0
    %746 = vmatpush1.msra.mxu0 0.0
    %747 = vmatprep.subr.mxu0 0.0
    %748 = vmatpush1.msra.mxu0 0.0
    %749 = vmatprep.subr.mxu0 0.0
    %750 = vmatpush1.msra.mxu0 0.0
    %751 = vmatprep.subr.mxu0 0.0
    %752 = vmatpush1.msra.mxu0 0.0
    %753 = vmatprep.subr.mxu0 0.0
    %754 = vmatpush1.msra.mxu0 0.0
    %755 = vmatprep.subr.mxu0 0.0
    %756 = vmatpush1.msra.mxu0 0.0
    %757 = vmatprep.subr.mxu0 0.0
    %758 = vmatpush1.msra.mxu0 0.0
    %759 = vmatprep.subr.mxu0 0.0
    %760 = vmatpush1.msra.mxu0 0.0
    %761 = vmatprep.subr.mxu0 0.0
    %762 = vmatpush1.msra.mxu0 0.0
    %763 = vmatprep.subr.mxu0 0.0
    %764 = vmatpush1.msra.mxu0 0.0
    %765 = vmatprep.subr.mxu0 0.0
    %766 = vmatpush1.msra.mxu0 0.0
    %767 = vmatprep.subr.mxu0 0.0
    %768 = vmatpush1.msra.mxu0 0.0
    %769 = vmatprep.subr.mxu0 0.0
    %770 = vmatpush1.msra.mxu0 0.0
    %771 = vmatprep.subr.mxu0 0.0
    %772 = vmatpush1.msra.mxu0 0.0
    %773 = vmatprep.subr.mxu0 0.0
    %774 = vmatpush1.msra.mxu0 0.0
    %775 = vmatprep.subr.mxu0 0.0
    %776 = vmatpush1.msra.mxu0 0.0
    %777 = vmatprep.subr.mxu0 0.0
    %778 = vmatpush1.msra.mxu0 0.0
    %779 = vmatprep.subr.mxu0 0.0
    %780 = vmatpush1.msra.mxu0 0.0
    %781 = vmatprep.subr.mxu0 0.0
    %782 = vmatpush1.msra.mxu0 0.0
    %783 = vmatprep.subr.mxu0 0.0
    %784 = vmatpush1.msra.mxu0 0.0
    %785 = vmatprep.subr.mxu0 0.0
    %786 = vmatpush1.msra.mxu0 0.0
    %787 = vmatprep.subr.mxu0 0.0
    %788 = vmatpush1.msra.mxu0 0.0
    %789 = vmatprep.mubr.f32.mxu0 0.0
    %790 = vmatmul.mubr.f32.gmra.mrb[0].mxu0 %v723
    %v791 = vpop.f32.mrb[0].mxu0
    %v792 = vadd.f32 %v721, %v791
    %v793 = vpop.f32.mrb[0].mxu0
    %794 = vdwg.mxu0
    %v795 = vld [vmem:[#allocation11] sm:$0xff]
    %v796 = vld [vmem:[#allocation11 + $0x8] sm:$0xff]
    %v797 = vld [vmem:[#allocation13] sm:$0x1]
    %vm798 = vcmask 130048
    %v800 = vsel %vm798, %v792, 0
    %802 = vmatprep.subr.mxu0 0.0
    %803 = vmatpush1.msra.mxu0 %v795
    %804 = vmatprep.subr.mxu0 0.0
    %805 = vmatpush1.msra.mxu0 %v796
    %806 = vmatprep.subr.mxu0 0.0
    %807 = vmatpush1.msra.mxu0 0.0
    %808 = vmatprep.subr.mxu0 0.0
    %809 = vmatpush1.msra.mxu0 0.0
    %810 = vmatprep.subr.mxu0 0.0
    %811 = vmatpush1.msra.mxu0 0.0
    %812 = vmatprep.subr.mxu0 0.0
    %813 = vmatpush1.msra.mxu0 0.0
    %814 = vmatprep.subr.mxu0 0.0
    %815 = vmatpush1.msra.mxu0 0.0
    %816 = vmatprep.subr.mxu0 0.0
    %817 = vmatpush1.msra.mxu0 0.0
    %818 = vmatprep.subr.mxu0 0.0
    %819 = vmatpush1.msra.mxu0 0.0
    %820 = vmatprep.subr.mxu0 0.0
    %821 = vmatpush1.msra.mxu0 0.0
    %822 = vmatprep.subr.mxu0 0.0
    %823 = vmatpush1.msra.mxu0 0.0
    %824 = vmatprep.subr.mxu0 0.0
    %825 = vmatpush1.msra.mxu0 0.0
    %826 = vmatprep.subr.mxu0 0.0
    %827 = vmatpush1.msra.mxu0 0.0
    %828 = vmatprep.subr.mxu0 0.0
    %829 = vmatpush1.msra.mxu0 0.0
    %830 = vmatprep.subr.mxu0 0.0
    %831 = vmatpush1.msra.mxu0 0.0
    %832 = vmatprep.subr.mxu0 0.0
    %833 = vmatpush1.msra.mxu0 0.0
    %834 = vmatprep.subr.mxu0 0.0
    %835 = vmatpush1.msra.mxu0 0.0
    %836 = vmatprep.subr.mxu0 0.0
    %837 = vmatpush1.msra.mxu0 0.0
    %838 = vmatprep.subr.mxu0 0.0
    %839 = vmatpush1.msra.mxu0 0.0
    %840 = vmatprep.subr.mxu0 0.0
    %841 = vmatpush1.msra.mxu0 0.0
    %842 = vmatprep.subr.mxu0 0.0
    %843 = vmatpush1.msra.mxu0 0.0
    %844 = vmatprep.subr.mxu0 0.0
    %845 = vmatpush1.msra.mxu0 0.0
    %846 = vmatprep.subr.mxu0 0.0
    %847 = vmatpush1.msra.mxu0 0.0
    %848 = vmatprep.subr.mxu0 0.0
    %849 = vmatpush1.msra.mxu0 0.0
    %850 = vmatprep.subr.mxu0 0.0
    %851 = vmatpush1.msra.mxu0 0.0
    %852 = vmatprep.subr.mxu0 0.0
    %853 = vmatpush1.msra.mxu0 0.0
    %854 = vmatprep.subr.mxu0 0.0
    %855 = vmatpush1.msra.mxu0 0.0
    %856 = vmatprep.subr.mxu0 0.0
    %857 = vmatpush1.msra.mxu0 0.0
    %858 = vmatprep.subr.mxu0 0.0
    %859 = vmatpush1.msra.mxu0 0.0
    %860 = vmatprep.subr.mxu0 0.0
    %861 = vmatpush1.msra.mxu0 0.0
    %862 = vmatprep.subr.mxu0 0.0
    %863 = vmatpush1.msra.mxu0 0.0
    %864 = vmatprep.subr.mxu0 0.0
    %865 = vmatpush1.msra.mxu0 0.0
    %866 = vmatprep.mubr.f32.mxu0 0.0
    %867 = vmatmul.mubr.f32.gmra.mrb[0].mxu0 %v800
    %v868 = vpop.f32.mrb[0].mxu0
    %v869 = vadd.f32 %v797, %v868
    %v870 = vpop.f32.mrb[0].mxu0
    %871 = vdwg.mxu0
    %vm872 = vcmask 122880
    %873 = vst.msk [vmem:[#allocation14] sm:$0x1] %vm872, %v869
    // Predicated region
    $region86: #{task_encoder_forward.1} parent=1 // pred_check
      _
    $region87: #{task_encoder_forward.1} parent=1 // pred_check_branch
      %875 = sbr.rel (0) target = $region89
    $region88: #{task_encoder_forward.1} parent=1 // pred_region
      %s877 = ssub.s32 16, 16
      %878 = vsyncadd [#allocation4], %s877
      %s880 = sshll.u32 [#allocation14], 4
      %s881 = int_to_ptr.vmem [resolvable:$true] %s880
      %883 = dma.vmem_to_hbm [thread:$0]  %s881, 16, %s14, [#allocation4]
    $region89: #{task_encoder_forward.1} parent=1 // pred_fallthru
      _
    // Predicated region
    $region90: #{task_encoder_forward.1} parent=1 // pred_check
      _
    $region91: #{task_encoder_forward.1} parent=1 // pred_check_branch
      %885 = sbr.rel (0) target = $region93
    $region92: #{task_encoder_forward.1} parent=1 // pred_region
      %886 = dma.done [#allocation4], 16
    $region93: #{task_encoder_forward.1} parent=1 // pred_fallthru
      _
    %887 = vsyncpa [#allocation3], 1
    %888 = vsyncpa [#allocation6], 1
    %889 = vsyncpa [#allocation9], 1
    %890 = vsyncpa [#allocation12], 1
    %891 = vsyncpa [#allocation4], 1

</llo_original>
